<compile_context>
chip_gen: v7x
topology: tpu7x:2x2x1
jax: 0.10.0
libtpu: 0.0.40
codegen_flags: <defaults>
</compile_context>

<pallas_src>
import math

import jax
import jax.numpy as jnp
from jax.experimental import pallas as pl
from jax.experimental.pallas import tpu as pltpu


def _make_sinusoidal_pe(embed_dim: int, max_seq_length: int = 32) -> jnp.ndarray:
    """Deterministic buffer matching the PyTorch __init__ (shape (1, max_seq, D))."""
    position = jnp.arange(max_seq_length, dtype=jnp.float32)[:, None]            # (S, 1)
    div_term = jnp.exp(
        jnp.arange(0, embed_dim, 2, dtype=jnp.float32)
        * (-math.log(10000.0) / embed_dim)
    )                                                                             # (ceil(D/2),)
    angles = position * div_term                                                  # (S, ceil(D/2))
    pe = jnp.zeros((max_seq_length, embed_dim), dtype=jnp.float32)
    pe = pe.at[:, 0::2].set(jnp.sin(angles))
    # slice cos to floor(D/2) columns so odd embed_dim does not shape-mismatch
    pe = pe.at[:, 1::2].set(jnp.cos(angles)[:, : embed_dim // 2])
    return pe[None]                                                               # (1, S, D)


def _add_pe_kernel(x_ref, pe_ref, o_ref):
    # Batch-tiled path: x/o are (bt, R, L) and pe is (R, L) -> broadcast add.
    # Row-tiled path:   batch is squeezed, all refs are (ts, L) -> plain add.
    o_ref[...] = (x_ref[...] + pe_ref[...]).astype(o_ref.dtype)


def _target_block_bytes() -> int:
    """Per-generation block size target (kept within default scoped-VMEM limits)."""
    try:
        kind = jax.devices()[0].device_kind.lower()
    except Exception:  # pragma: no cover - device query should not fail on TPU
        kind = ""
    if "v5" in kind:                     # v5e: 16 MiB default scoped VMEM
        return 2 * 1024 * 1024
    return 4 * 1024 * 1024               # v6e / v7x: 32 MiB default scoped VMEM


def _pick_row_tile(num_rows: int, lanes: int, itemsize: int, target_bytes: int) -> int:
    """Rows per block: ~target_bytes, multiple of the sublane packing, or full extent."""
    sub = max(8, 32 // itemsize)          # 8 for f32, 16 for bf16, 32 for int8
    if num_rows <= sub:
        return num_rows
    ts = max(sub, (target_bytes // (lanes * itemsize)) // sub * sub)
    return num_rows if ts >= num_rows else int(ts)


def sinusoidal_positional_embedding(x: jnp.ndarray, pe: jnp.ndarray,
                                    block_bytes: int | None = None) -> jnp.ndarray:
    """x: (B, S, D);  pe: (1, max_seq, D).  Returns x + pe[:, :S]."""
    B, S, D = x.shape
    max_seq = pe.shape[1]
    assert S <= max_seq, f"seq_length {S} exceeds max_seq_length {max_seq}"
    assert pe.shape[2] == D, f"embed_dim mismatch: x has {D}, pe has {pe.shape[2]}"

    pe_slice = pe[0, :S, :].astype(x.dtype)                  # (S, D), same dtype as x

    # Choose a lane-dense 2-D view of the per-batch slab.
    if D % 128 == 0:
        R, L = S, D
        x_view, pe_view = x, pe_slice
    elif (S * D) % 128 == 0:
        L = 128
        R = (S * D) // L
        x_view = x.reshape(B, R, L)
        pe_view = pe_slice.reshape(R, L)
    else:
        # TODO(synk): split the <128-element tail into its own tiny block so the
        # bulk stays lane-dense; this branch currently uses masked partial stores.
        R, L = S, D
        x_view, pe_view = x, pe_slice

    itemsize = jnp.dtype(x.dtype).itemsize
    target = block_bytes if block_bytes is not None else _target_block_bytes()
    slab_bytes = R * L * itemsize

    if slab_bytes <= target:
        # Small per-batch slab: tile over batch; PE is a single resident block
        # (constant block index -> fetched from HBM exactly once).
        bt = max(1, min(B, target // max(slab_bytes, 1)))
        grid = (pl.cdiv(B, bt),)
        in_specs = [
            pl.BlockSpec((bt, R, L), lambda i: (i, 0, 0)),
            pl.BlockSpec((R, L), lambda i: (0, 0)),
        ]
        out_specs = pl.BlockSpec((bt, R, L), lambda i: (i, 0, 0))
        dim_sem = ("parallel",)
    else:
        # Large slab: row-tile. Batch is the fastest grid axis, so the PE block
        # index is unchanged between consecutive steps and its re-DMA is skipped.
        ts = _pick_row_tile(R, L, itemsize, target)
        grid = (pl.cdiv(R, ts), B)
        in_specs = [
            pl.BlockSpec((pl.Squeezed(), ts, L), lambda s, b: (b, s, 0)),
            pl.BlockSpec((ts, L), lambda s, b: (s, 0)),
        ]
        out_specs = pl.BlockSpec((pl.Squeezed(), ts, L), lambda s, b: (b, s, 0))
        dim_sem = ("parallel", "arbitrary")   # shard rows across TCs, keep b inner

    out = pl.pallas_call(
        _add_pe_kernel,
        out_shape=jax.ShapeDtypeStruct((B, R, L), x.dtype),
        grid_spec=pltpu.PrefetchScalarGridSpec(
            num_scalar_prefetch=0,
            grid=grid,
            in_specs=in_specs,
            out_specs=out_specs,
        ),
        compiler_params=pltpu.CompilerParams(dimension_semantics=dim_sem),
        # TODO(synk): under jit with x donated, add input_output_aliases={0: 0} to
        # drop the extra output HBM allocation for very large activations.
    )(x_view, pe_view)

    return out.reshape(B, S, D)


if __name__ == "__main__":
    key = jax.random.PRNGKey(0)

    # --- primary demo shape (matches the PyTorch module defaults) -----------
    embed_dim = 32
    max_seq_length = 32
    batch = 2
    seq = 8

    pe = _make_sinusoidal_pe(embed_dim, max_seq_length)
    x = jax.random.normal(key, (batch, seq, embed_dim), dtype=jnp.float32)

    out = jax.block_until_ready(sinusoidal_positional_embedding(x, pe))
    ref = x + pe[:, :seq]
    assert out.shape == (batch, seq, embed_dim)
    assert jnp.allclose(out, ref, atol=1e-6), "mismatch (batch-tiled, (R,128) view)"

    # --- D % 128 == 0 path (still batch-tiled / single block) ---------------
    embed_dim2, seq2, batch2 = 128, 16, 1
    pe2 = _make_sinusoidal_pe(embed_dim2, max_seq_length)
    x2 = jax.random.normal(jax.random.PRNGKey(0), (batch2, seq2, embed_dim2),
                           dtype=jnp.float32)
    out2 = jax.block_until_ready(sinusoidal_positional_embedding(x2, pe2))
    ref2 = x2 + pe2[:, :seq2]
    assert jnp.allclose(out2, ref2, atol=1e-6), "mismatch (D=128 path)"

    # --- row-tiled path (batch innermost, PE DMA-skip), forced via tiny target ---
    embed_dim3, seq3, batch3, max_seq3 = 128, 64, 2, 64
    pe3 = _make_sinusoidal_pe(embed_dim3, max_seq3)
    x3 = jax.random.normal(jax.random.PRNGKey(0), (batch3, seq3, embed_dim3),
                           dtype=jnp.float32)
    out3 = jax.block_until_ready(
        sinusoidal_positional_embedding(x3, pe3, block_bytes=8 * 1024))
    ref3 = x3 + pe3[:, :seq3]
    assert jnp.allclose(out3, ref3, atol=1e-6), "mismatch (row-tiled path)"

    print("KERNEL_OK")
</pallas_src>

<mosaic_0001>
module attributes {stable_mosaic.version = 11 : i64} {
  func.func @_add_pe_kernel(%arg0: i32, %arg1: memref<2x2x128xf32, #tpu.memory_space<vmem>>, %arg2: memref<2x128xf32, #tpu.memory_space<vmem>>, %arg3: memref<2x2x128xf32, #tpu.memory_space<vmem>>) attributes {dimension_semantics = [#tpu.dimension_semantics<parallel>], iteration_bounds = array<i64: 1>, scalar_prefetch = 0 : i64, scratch_operands = 0 : i64, tpu.core_type = #tpu.core_type<tc>, window_params = [{transform_indices = @transform_0, window_bounds = array<i64: 2, 2, 128>}, {pipeline_mode = #tpu.pipeline_mode<synchronous>, transform_indices = @transform_1, window_bounds = array<i64: 2, 128>}, {transform_indices = @transform_2, window_bounds = array<i64: 2, 2, 128>}]} {
    %c0 = arith.constant 0 : index
    %c0_0 = arith.constant 0 : index
    %c0_1 = arith.constant 0 : index
    %0 = vector.load %arg1[%c0, %c0_0, %c0_1] : memref<2x2x128xf32, #tpu.memory_space<vmem>>, vector<2x2x128xf32>
    %c0_2 = arith.constant 0 : index
    %c0_3 = arith.constant 0 : index
    %1 = vector.load %arg2[%c0_2, %c0_3] : memref<2x128xf32, #tpu.memory_space<vmem>>, vector<2x128xf32>
    %2 = vector.shape_cast %1 : vector<2x128xf32> to vector<1x2x128xf32>
    %3 = vector.broadcast %2 : vector<1x2x128xf32> to vector<2x2x128xf32>
    %4 = arith.addf %0, %3 : vector<2x2x128xf32>
    %c0_4 = arith.constant 0 : index
    %c0_5 = arith.constant 0 : index
    %c0_6 = arith.constant 0 : index
    %5 = vector.load %arg3[%c0_4, %c0_5, %c0_6] : memref<2x2x128xf32, #tpu.memory_space<vmem>>, vector<2x2x128xf32>
    tpu.vector_store %arg3[%c0_4, %c0_5, %c0_6], %4 {strides = array<i32>} : memref<2x2x128xf32, #tpu.memory_space<vmem>>, vector<2x2x128xf32>,
    return
  }
  func.func @transform_0(%arg0: i32) -> (i32, i32, i32) {
    %c0_i32 = arith.constant 0 : i32
    %c0_i32_0 = arith.constant 0 : i32
    %c0_i32_1 = arith.constant 0 : i32
    return %arg0, %c0_i32, %c0_i32_0 : i32, i32, i32
  }
  func.func @transform_1(%arg0: i32) -> (i32, i32) {
    %c0_i32 = arith.constant 0 : i32
    %c0_i32_0 = arith.constant 0 : i32
    %c0_i32_1 = arith.constant 0 : i32
    return %c0_i32, %c0_i32_0 : i32, i32
  }
  func.func @transform_2(%arg0: i32) -> (i32, i32, i32) {
    %c0_i32 = arith.constant 0 : i32
    %c0_i32_0 = arith.constant 0 : i32
    %c0_i32_1 = arith.constant 0 : i32
    return %arg0, %c0_i32, %c0_i32_0 : i32, i32, i32
  }
}

</mosaic_0001>

<llo_original>
// kernel: tpu_custom_call.1
$region0: #{tpu_custom_call.1}
  #allocation0 [shape = 'u32[]', space=smem, size = 0x4, offset = 0x4, fixed_abs, tag = 'smem constant byte address 0x4 - core index']
  #allocation1 [shape = 'u32[144,128]{1,0:T(1,128)}', space=vmem, size = 0x12000, scoped, tag = 'internal scratch']
  %s0 = inlined_call_operand.hbm [shape: f32[2,2,128], index: 0, kind: input, shape index: {}]
  %s1 = inlined_call_operand.vmem [shape: f32[2,128], index: 1, kind: input, shape index: {}]
  %s2 = inlined_call_operand.hbm [shape: f32[2,2,128], index: 2, kind: output, shape index: {}]
  %s3 = sld [smem:[#allocation0]]
  $region22: #{tpu_custom_call.1} parent=0
    _
  %s5 = ssub.s32 1, %s3
  %s6 = scalar_select 0, %s5, %s3
  $region1: #{tpu_custom_call.1} parent=0
    #allocation2 [shape = 'u8[2048]{0}', space=vmem, size = 0x800, scoped, tag = 'input window, operand 0, single buffered']
    #allocation3 [shape = 's32[1]{0}', space=sflag, size = 0x4, scoped, tag = 'scoped memory for tpu_custom_call.1']
    #allocation4 [shape = 's32[1]{0}', space=sflag, size = 0x4, scoped, tag = 'scoped memory for tpu_custom_call.1']
    #allocation5 [shape = 'u8[2048]{0}', space=vmem, size = 0x800, scoped, tag = 'output window, operand 0, single buffered']
    %7 = vsyncpa [#allocation3], 0
    %8 = vsyncpa [#allocation4], 0
    // Predicated region
    $region2: #{tpu_custom_call.1} parent=1 // pred_check
      _
    $region3: #{tpu_custom_call.1} parent=1 // pred_check_branch
      %10 = sbr.rel (0) target = $region5
    $region4: #{tpu_custom_call.1} parent=1 // pred_region
      %s12 = ssub.s32 64, 64
      %13 = vsyncadd [#allocation3], %s12
      %s14 = sshll.u32 [#allocation2], 4
      %s15 = int_to_ptr.vmem [resolvable:$true] %s14
      %20 = dma.hbm_to_vmem [thread:$0]  %s0, 64, %s15, [#allocation3], 32, 32, 2
    $region5: #{tpu_custom_call.1} parent=1 // pred_fallthru
      _
    // Predicated region
    $region6: #{tpu_custom_call.1} parent=1 // pred_check
      _
    $region7: #{tpu_custom_call.1} parent=1 // pred_check_branch
      %22 = sbr.rel (0) target = $region9
    $region8: #{tpu_custom_call.1} parent=1 // pred_region
      _
    $region9: #{tpu_custom_call.1} parent=1 // pred_fallthru
      _
    // Predicated region
    $region10: #{tpu_custom_call.1} parent=1 // pred_check
      _
    $region11: #{tpu_custom_call.1} parent=1 // pred_check_branch
      %24 = sbr.rel (0) target = $region13
    $region12: #{tpu_custom_call.1} parent=1 // pred_region
      %25 = dma.done [#allocation3], 64
    $region13: #{tpu_custom_call.1} parent=1 // pred_fallthru
      _
    %v26 = vld [vmem:[#allocation2] sm:$0x3]
    %v27 = vld [vmem:[#allocation2 + $0x2] sm:$0x3]
    %v28 = vld [vmem:[%s1] sm:$0x3]
    %v29 = vadd.f32 %v26, %v28
    %v30 = vadd.f32 %v27, %v28
    %31 = vst [vmem:[#allocation5] sm:$0x3] %v29
    %32 = vst [vmem:[#allocation5 + $0x2] sm:$0x3] %v30
    // Predicated region
    $region14: #{tpu_custom_call.1} parent=1 // pred_check
      _
    $region15: #{tpu_custom_call.1} parent=1 // pred_check_branch
      %34 = sbr.rel (0) target = $region17
    $region16: #{tpu_custom_call.1} parent=1 // pred_region
      %s36 = ssub.s32 64, 64
      %37 = vsyncadd [#allocation4], %s36
      %s38 = sshll.u32 [#allocation5], 4
      %s39 = int_to_ptr.vmem [resolvable:$true] %s38
      %44 = dma.vmem_to_hbm [thread:$0]  %s39, 64, %s2, [#allocation4], 32, 32, 2
    $region17: #{tpu_custom_call.1} parent=1 // pred_fallthru
      _
    // Predicated region
    $region18: #{tpu_custom_call.1} parent=1 // pred_check
      _
    $region19: #{tpu_custom_call.1} parent=1 // pred_check_branch
      %46 = sbr.rel (0) target = $region21
    $region20: #{tpu_custom_call.1} parent=1 // pred_region
      %47 = dma.done [#allocation4], 64
    $region21: #{tpu_custom_call.1} parent=1 // pred_fallthru
      _
    %48 = vsyncpa [#allocation3], 1
    %49 = vsyncpa [#allocation4], 1

</llo_original>
